<compile_context>
chip_gen: v6e
topology: v6e:2x2x1
jax: 0.10.0
libtpu: 0.0.40
codegen_flags: <defaults>
</compile_context>

<pallas_src>
import functools
import math

import jax
import jax.numpy as jnp
from jax import lax
from jax.experimental import pallas as pl
from jax.experimental.pallas import tpu as pltpu


def _round_up(a, b):
    return (a + b - 1) // b * b


def _arcface_kernel(x_ref, w_ref, label_ref, out_ref, loss_ref,
                    invx_ref, m_ref, l_ref, t_ref,
                    *, scale, cos_m, sin_m, th, mm, easy_margin, ls_eps,
                    out_features, tile_c, padded_c, w_transposed):
    k = pl.program_id(1)
    nk = pl.num_programs(1)

    # ---- once per batch tile (first class tile): 1/||x|| and LSE carry init ----
    @pl.when(k == 0)
    def _():
        x32 = x_ref[...].astype(jnp.float32)
        # rsqrt on clamped squared norm == F.normalize(eps=1e-12) semantics.
        invx_ref[...] = lax.rsqrt(
            jnp.maximum(jnp.sum(x32 * x32, axis=-1, keepdims=True), 1e-24))
        m_ref[...] = jnp.full(m_ref.shape, -jnp.inf, jnp.float32)
        l_ref[...] = jnp.zeros(l_ref.shape, jnp.float32)
        t_ref[...] = jnp.zeros(t_ref.shape, jnp.float32)

    x = x_ref[...]
    w = w_ref[...]
    mm_dtype = jnp.promote_types(x.dtype, w.dtype)

    if w_transposed:
        # Weight block is (D, TILE_C): raw tile feeds the MXU directly; the per-class
        # inverse norms come out lane-oriented (1, TILE_C) with no relayout.
        w32 = w.astype(jnp.float32)
        inv_w = lax.rsqrt(
            jnp.maximum(jnp.sum(w32 * w32, axis=0, keepdims=True), 1e-24))   # (1, TC)
        raw = jnp.dot(x.astype(mm_dtype), w.astype(mm_dtype),
                      preferred_element_type=jnp.float32)                    # (TB, TC)
        cosine = raw * invx_ref[...] * inv_w
    else:
        # PyTorch-layout (TILE_C, D) block: normalize rows (f32 accumulation), cast
        # back to the streaming dtype so the MXU still runs its native path.
        w32 = w.astype(jnp.float32)
        inv_w = lax.rsqrt(
            jnp.maximum(jnp.sum(w32 * w32, axis=-1, keepdims=True), 1e-24))  # (TC, 1)
        w_n = (w32 * inv_w).astype(mm_dtype)
        raw = lax.dot_general(x.astype(mm_dtype), w_n,
                              (((1,), (1,)), ((), ())),
                              preferred_element_type=jnp.float32)            # (TB, TC)
        cosine = raw * invx_ref[...]

    sine = jnp.sqrt(jnp.maximum(1.0 - cosine * cosine, 0.0))
    phi = cosine * cos_m - sine * sin_m
    if easy_margin:
        phi = jnp.where(cosine > 0.0, phi, cosine)
    else:
        phi = jnp.where(cosine > th, phi, cosine - mm)

    tb, tc = cosine.shape
    label = label_ref[...]                                           # (TB, 1) int32
    class_ids = k * tile_c + lax.broadcasted_iota(jnp.int32, (tb, tc), 1)
    is_target = class_ids == label

    if ls_eps > 0.0:
        one_hot = (1.0 - ls_eps) * is_target.astype(jnp.float32) + ls_eps / out_features
        output = (one_hot * phi + (1.0 - one_hot) * cosine) * scale
    else:
        # ls_eps == 0 fast path: single select, no one-hot blend arithmetic.
        output = jnp.where(is_target, phi, cosine) * scale

    if padded_c:
        # Only the ragged last class tile has invalid columns (undefined weight data).
        valid = class_ids < out_features
        out_ref[...] = jnp.where(valid, output, 0.0).astype(out_ref.dtype)
        lse_in = jnp.where(valid, output, -jnp.inf)
    else:
        out_ref[...] = output.astype(out_ref.dtype)
        lse_in = output

    # ---- online logsumexp + target-logit accumulation for cross entropy ----
    m_prev = m_ref[...]
    m_new = jnp.maximum(m_prev, jnp.max(lse_in, axis=-1, keepdims=True))
    l_ref[...] = (l_ref[...] * jnp.exp(m_prev - m_new)
                  + jnp.sum(jnp.exp(lse_in - m_new), axis=-1, keepdims=True))
    m_ref[...] = m_new
    # where() (not multiply) so undefined ragged-tile values never leak into the loss.
    t_ref[...] = t_ref[...] + jnp.sum(jnp.where(is_target, output, 0.0),
                                      axis=-1, keepdims=True)

    @pl.when(k == nk - 1)
    def _():
        loss_ref[...] = m_ref[...] + jnp.log(l_ref[...]) - t_ref[...]


def _vmem_budget_bytes():
    """~3/4 of physical VMEM: ~96 MiB on v5e/v6e (128 MiB), ~48 MiB on v7x (64 MiB)."""
    cap = 64 * 1024 * 1024
    try:
        cap = int(getattr(pltpu.get_tpu_info(), "vmem_capacity_bytes", cap))
    except Exception:
        pass
    return max(int(cap * 3 // 4), 32 * 1024 * 1024)


def arc_margin_product(x, weight, label, *, scale=30.0, margin=0.5,
                       easy_margin=False, ls_eps=0.0, tile_c=None, tile_b=None,
                       out_dtype=None, weight_transposed=False):
    """Returns (scaled logits (B, C) in out_dtype (default x.dtype), mean CE loss).

    weight: (out_features, in_features) PyTorch layout, or its persistently stored
    transpose (in_features, out_features) when weight_transposed=True (fast path:
    no per-call relayout, post-matmul normalization).
    """
    B, D = x.shape
    if weight_transposed:
        Dw, C = weight.shape
    else:
        C, Dw = weight.shape
    assert D == Dw, (D, Dw)
    if out_dtype is None:
        out_dtype = x.dtype

    label2d = label.reshape(B, 1).astype(jnp.int32)

    w_item = jnp.dtype(weight.dtype).itemsize
    x_item = jnp.dtype(x.dtype).itemsize
    out_item = jnp.dtype(out_dtype).itemsize

    # --- batch tiling ("parallel" axis -> megacore sharding on multi-TC chips) ---
    if tile_b is None:
        tile_b = B if B <= 256 else 256
    else:
        tile_b = min(int(tile_b), B)
        if tile_b < B:
            tile_b = max(8, tile_b // 8 * 8)
    grid_b = pl.cdiv(B, tile_b)

    # --- class tiling: ~2 MiB streamed weight tile, shrunk to the VMEM budget ---
    c_cap = _round_up(C, 128)
    if tile_c is None:
        tile_c = max(512, (2 * 1024 * 1024) // max(D * w_item, 1))
    tile_c = _round_up(min(int(tile_c), c_cap), 128)

    budget = _vmem_budget_bytes()

    def working_set(tc):
        return int(2 * D * tc * w_item            # streamed weight tile (x2 buffers)
                   + 2 * tile_b * tc * out_item   # logits tile (x2 buffers)
                   + 8 * tile_b * tc * 4          # live f32 intermediates of the slab
                   + 2 * tile_b * D * x_item      # resident x block
                   + 16 * tile_b * 4              # label/loss blocks + f32 scratch
                   + (4 << 20))                   # compiler headroom

    while tile_c > 128 and working_set(tile_c) > budget:
        tile_c -= 128
    grid_c = pl.cdiv(C, tile_c)
    padded_c = (C % tile_c) != 0

    vmem_limit = int(min(max(working_set(tile_c), 32 * 1024 * 1024), budget))

    kernel = functools.partial(
        _arcface_kernel,
        scale=float(scale),
        cos_m=math.cos(margin),
        sin_m=math.sin(margin),
        th=math.cos(math.pi - margin),
        mm=math.sin(math.pi - margin) * margin,
        easy_margin=bool(easy_margin),
        ls_eps=float(ls_eps),
        out_features=C,
        tile_c=tile_c,
        padded_c=padded_c,
        w_transposed=bool(weight_transposed),
    )

    if weight_transposed:
        w_spec = pl.BlockSpec((D, tile_c), lambda b, k: (0, k))
    else:
        w_spec = pl.BlockSpec((tile_c, D), lambda b, k: (k, 0))

    cp = grid_c * tile_c
    cost = pl.CostEstimate(
        flops=2 * B * cp * D + 3 * grid_b * cp * D + 20 * B * cp,
        transcendentals=3 * B * cp + grid_b * cp + 4 * B,
        bytes_accessed=(grid_b * cp * D * w_item + B * D * x_item
                        + B * cp * out_item + 12 * B),
    )

    out, loss_rows = pl.pallas_call(
        kernel,
        out_shape=(
            jax.ShapeDtypeStruct((B, C), out_dtype),
            jax.ShapeDtypeStruct((B, 1), jnp.float32),
        ),
        grid=(grid_b, grid_c),
        in_specs=[
            pl.BlockSpec((tile_b, D), lambda b, k: (b, 0)),   # x: resident per batch tile
            w_spec,                                           # weight: streamed per class tile
            pl.BlockSpec((tile_b, 1), lambda b, k: (b, 0)),   # labels: resident
        ],
        out_specs=(
            pl.BlockSpec((tile_b, tile_c), lambda b, k: (b, k)),  # scaled logits tile
            pl.BlockSpec((tile_b, 1), lambda b, k: (b, 0)),       # per-row CE (last k only)
        ),
        scratch_shapes=[
            pltpu.VMEM((tile_b, 1), jnp.float32),   # 1 / ||x||
            pltpu.VMEM((tile_b, 1), jnp.float32),   # running max  m
            pltpu.VMEM((tile_b, 1), jnp.float32),   # running sum  l
            pltpu.VMEM((tile_b, 1), jnp.float32),   # target logit t
        ],
        compiler_params=pltpu.CompilerParams(
            dimension_semantics=("parallel", "arbitrary"),
            vmem_limit_bytes=vmem_limit,
        ),
        cost_estimate=cost,
    )(x, weight, label2d)

    return out, jnp.mean(loss_rows)


def _reference(x, weight, label, *, scale, margin, easy_margin, ls_eps):
    """Pure-JAX reference of the PyTorch module (weight in (C, D) layout)."""
    xn = x / jnp.maximum(jnp.linalg.norm(x, axis=-1, keepdims=True), 1e-12)
    wn = weight / jnp.maximum(jnp.linalg.norm(weight, axis=-1, keepdims=True), 1e-12)
    cos = jnp.dot(xn, wn.T, precision=lax.Precision.HIGHEST)
    sin = jnp.sqrt(jnp.maximum(1.0 - cos * cos, 0.0))
    phi = cos * math.cos(margin) - sin * math.sin(margin)
    if easy_margin:
        phi = jnp.where(cos > 0.0, phi, cos)
    else:
        phi = jnp.where(cos > math.cos(math.pi - margin), phi,
                        cos - math.sin(math.pi - margin) * margin)
    onehot = jax.nn.one_hot(label, weight.shape[0], dtype=jnp.float32)
    if ls_eps > 0.0:
        onehot = (1.0 - ls_eps) * onehot + ls_eps / weight.shape[0]
    out = (onehot * phi + (1.0 - onehot) * cos) * scale
    lse = jax.nn.logsumexp(out, axis=-1)
    tgt = jnp.take_along_axis(out, label[:, None], axis=1)[:, 0]
    return out, jnp.mean(lse - tgt)


if __name__ == "__main__":
    key = jax.random.PRNGKey(0)
    k_x, k_w, k_l = jax.random.split(key, 3)

    batch = 8
    in_features = 64
    out_features = 512

    # Xavier-uniform init, as in nn.init.xavier_uniform_ on (out_features, in_features).
    bound = math.sqrt(6.0 / (in_features + out_features))
    weight = jax.random.uniform(k_w, (out_features, in_features),
                                minval=-bound, maxval=bound, dtype=jnp.float32)
    x = jax.random.normal(k_x, (batch, in_features), dtype=jnp.float32)
    label = jax.random.randint(k_l, (batch,), 0, out_features, dtype=jnp.int32)

    # --- Config A: default (C, D) weight path, divisible class tiling (4 grid steps).
    logits, loss = arc_margin_product(x, weight, label, scale=30.0, margin=0.5,
                                      easy_margin=False, ls_eps=0.0, tile_c=128)
    jax.block_until_ready((logits, loss))
    ref_logits, ref_loss = _reference(x, weight, label, scale=30.0, margin=0.5,
                                      easy_margin=False, ls_eps=0.0)
    assert logits.shape == (batch, out_features)
    assert loss.shape == ()
    assert bool(jnp.isfinite(loss))
    assert bool(jnp.allclose(logits, ref_logits, atol=5e-2, rtol=1e-3))
    assert bool(jnp.allclose(loss, ref_loss, atol=5e-3, rtol=1e-3))

    # --- Config B: persistently transposed weight fast path, ragged last class tile,
    #     label smoothing.  No jnp.pad / output slice anywhere.
    C2 = 500
    weight2 = weight[:C2]
    weight2_t = jnp.asarray(weight2.T)              # stored transposed once
    label2 = jnp.clip(label, 0, C2 - 1)
    logits2, loss2 = arc_margin_product(x, weight2_t, label2, scale=30.0, margin=0.5,
                                        easy_margin=False, ls_eps=0.1, tile_c=128,
                                        weight_transposed=True)
    jax.block_until_ready((logits2, loss2))
    ref_logits2, ref_loss2 = _reference(x, weight2, label2, scale=30.0, margin=0.5,
                                        easy_margin=False, ls_eps=0.1)
    assert logits2.shape == (batch, C2)
    assert bool(jnp.isfinite(loss2))
    assert bool(jnp.allclose(logits2, ref_logits2, atol=5e-2, rtol=1e-3))
    assert bool(jnp.allclose(loss2, ref_loss2, atol=5e-3, rtol=1e-3))

    print("KERNEL_OK")
</pallas_src>

<mosaic_0001>
module attributes {stable_mosaic.version = 11 : i64} {
  func.func @_arcface_kernel(%arg0: i32, %arg1: i32, %arg2: memref<8x64xf32, #tpu.memory_space<vmem>>, %arg3: memref<128x64xf32, #tpu.memory_space<vmem>>, %arg4: memref<8x1xi32, #tpu.memory_space<vmem>>, %arg5: memref<8x128xf32, #tpu.memory_space<vmem>>, %arg6: memref<8x1xf32, #tpu.memory_space<vmem>>, %arg7: memref<8x1xf32, #tpu.memory_space<vmem>>, %arg8: memref<8x1xf32, #tpu.memory_space<vmem>>, %arg9: memref<8x1xf32, #tpu.memory_space<vmem>>, %arg10: memref<8x1xf32, #tpu.memory_space<vmem>>) attributes {dimension_semantics = [#tpu.dimension_semantics<parallel>, #tpu.dimension_semantics<arbitrary>], iteration_bounds = array<i64: 1, 4>, scalar_prefetch = 0 : i64, scratch_operands = 4 : i64, tpu.core_type = #tpu.core_type<tc>, window_params = [{transform_indices = @transform_0, window_bounds = array<i64: 8, 64>}, {transform_indices = @transform_1, window_bounds = array<i64: 128, 64>}, {transform_indices = @transform_2, window_bounds = array<i64: 8, 1>}, {transform_indices = @transform_3, window_bounds = array<i64: 8, 128>}, {transform_indices = @transform_4, window_bounds = array<i64: 8, 1>}]} {
    %c0_i32 = arith.constant 0 : i32
    %0 = arith.cmpi eq, %arg1, %c0_i32 : i32
    %1 = arith.extui %0 : i1 to i32
    %c0_i32_0 = arith.constant 0 : i32
    %2 = arith.cmpi ne, %1, %c0_i32_0 : i32
    scf.if %2 {
      %c0_36 = arith.constant 0 : index
      %c0_37 = arith.constant 0 : index
      %70 = vector.load %arg2[%c0_36, %c0_37] : memref<8x64xf32, #tpu.memory_space<vmem>>, vector<8x64xf32>
      %71 = arith.mulf %70, %70 : vector<8x64xf32>
      %cst_38 = arith.constant dense<0.000000e+00> : vector<8xf32>
      %72 = vector.multi_reduction <add>, %71, %cst_38 [1] : vector<8x64xf32> to vector<8xf32>
      %73 = vector.shape_cast %72 : vector<8xf32> to vector<8x1xf32>
      %cst_39 = arith.constant 1.000000e-24 : f32
      %74 = vector.broadcast %cst_39 : f32 to vector<8x1xf32>
      %75 = arith.maximumf %73, %74 : vector<8x1xf32>
      %76 = math.rsqrt %75 : vector<8x1xf32>
      %c0_40 = arith.constant 0 : index
      %c0_41 = arith.constant 0 : index
      %77 = vector.load %arg7[%c0_40, %c0_41] : memref<8x1xf32, #tpu.memory_space<vmem>>, vector<8x1xf32>
      tpu.vector_store %arg7[%c0_40, %c0_41], %76 {strides = array<i32>} : memref<8x1xf32, #tpu.memory_space<vmem>>, vector<8x1xf32>,
      %cst_42 = arith.constant 0xFF800000 : f32
      %78 = vector.broadcast %cst_42 : f32 to vector<8x1xf32>
      %c0_43 = arith.constant 0 : index
      %c0_44 = arith.constant 0 : index
      %79 = vector.load %arg8[%c0_43, %c0_44] : memref<8x1xf32, #tpu.memory_space<vmem>>, vector<8x1xf32>
      tpu.vector_store %arg8[%c0_43, %c0_44], %78 {strides = array<i32>} : memref<8x1xf32, #tpu.memory_space<vmem>>, vector<8x1xf32>,
      %cst_45 = arith.constant 0.000000e+00 : f32
      %80 = vector.broadcast %cst_45 : f32 to vector<8x1xf32>
      %c0_46 = arith.constant 0 : index
      %c0_47 = arith.constant 0 : index
      %81 = vector.load %arg9[%c0_46, %c0_47] : memref<8x1xf32, #tpu.memory_space<vmem>>, vector<8x1xf32>
      tpu.vector_store %arg9[%c0_46, %c0_47], %80 {strides = array<i32>} : memref<8x1xf32, #tpu.memory_space<vmem>>, vector<8x1xf32>,
      %cst_48 = arith.constant 0.000000e+00 : f32
      %82 = vector.broadcast %cst_48 : f32 to vector<8x1xf32>
      %c0_49 = arith.constant 0 : index
      %c0_50 = arith.constant 0 : index
      %83 = vector.load %arg10[%c0_49, %c0_50] : memref<8x1xf32, #tpu.memory_space<vmem>>, vector<8x1xf32>
      tpu.vector_store %arg10[%c0_49, %c0_50], %82 {strides = array<i32>} : memref<8x1xf32, #tpu.memory_space<vmem>>, vector<8x1xf32>,
    } else {
    }
    %c0 = arith.constant 0 : index
    %c0_1 = arith.constant 0 : index
    %3 = vector.load %arg2[%c0, %c0_1] : memref<8x64xf32, #tpu.memory_space<vmem>>, vector<8x64xf32>
    %c0_2 = arith.constant 0 : index
    %c0_3 = arith.constant 0 : index
    %4 = vector.load %arg3[%c0_2, %c0_3] : memref<128x64xf32, #tpu.memory_space<vmem>>, vector<128x64xf32>
    %5 = arith.mulf %4, %4 : vector<128x64xf32>
    %cst = arith.constant dense<0.000000e+00> : vector<128xf32>
    %6 = vector.multi_reduction <add>, %5, %cst [1] : vector<128x64xf32> to vector<128xf32>
    %7 = vector.shape_cast %6 : vector<128xf32> to vector<128x1xf32>
    %cst_4 = arith.constant 1.000000e-24 : f32
    %8 = vector.broadcast %cst_4 : f32 to vector<128x1xf32>
    %9 = arith.maximumf %7, %8 : vector<128x1xf32>
    %10 = math.rsqrt %9 : vector<128x1xf32>
    %11 = vector.broadcast %10 : vector<128x1xf32> to vector<128x64xf32>
    %12 = arith.mulf %4, %11 : vector<128x64xf32>
    %cst_5 = arith.constant dense<0.000000e+00> : vector<8x128xf32>
    %13 = tpu.matmul %3, %12, %cst_5 {dimension_numbers = #tpu.dot_dimension_numbers<[1], [1], [0], [0], [0, 0, 1, 0], [], []>} : vector<8x64xf32>, vector<128x64xf32>, vector<8x128xf32> -> vector<8x128xf32>
    %c0_6 = arith.constant 0 : index
    %c0_7 = arith.constant 0 : index
    %14 = vector.load %arg7[%c0_6, %c0_7] : memref<8x1xf32, #tpu.memory_space<vmem>>, vector<8x1xf32>
    %15 = vector.broadcast %14 : vector<8x1xf32> to vector<8x128xf32>
    %16 = arith.mulf %13, %15 : vector<8x128xf32>
    %17 = arith.mulf %16, %16 : vector<8x128xf32>
    %cst_8 = arith.constant 1.000000e+00 : f32
    %18 = vector.broadcast %cst_8 : f32 to vector<8x128xf32>
    %19 = arith.subf %18, %17 : vector<8x128xf32>
    %cst_9 = arith.constant 0.000000e+00 : f32
    %20 = vector.broadcast %cst_9 : f32 to vector<8x128xf32>
    %21 = arith.maximumf %19, %20 : vector<8x128xf32>
    %22 = math.sqrt %21 : vector<8x128xf32>
    %cst_10 = arith.constant 0.87758255 : f32
    %23 = vector.broadcast %cst_10 : f32 to vector<8x128xf32>
    %24 = arith.mulf %16, %23 : vector<8x128xf32>
    %cst_11 = arith.constant 0.47942555 : f32
    %25 = vector.broadcast %cst_11 : f32 to vector<8x128xf32>
    %26 = arith.mulf %22, %25 : vector<8x128xf32>
    %27 = arith.subf %24, %26 : vector<8x128xf32>
    %cst_12 = arith.constant -0.87758255 : f32
    %28 = vector.broadcast %cst_12 : f32 to vector<8x128xf32>
    %29 = arith.cmpf ogt, %16, %28 : vector<8x128xf32>
    %cst_13 = arith.constant 0.239712775 : f32
    %30 = vector.broadcast %cst_13 : f32 to vector<8x128xf32>
    %31 = arith.subf %16, %30 : vector<8x128xf32>
    %32 = arith.select %29, %27, %31 : vector<8x128xi1>, vector<8x128xf32>
    %c0_14 = arith.constant 0 : index
    %c0_15 = arith.constant 0 : index
    %33 = vector.load %arg4[%c0_14, %c0_15] : memref<8x1xi32, #tpu.memory_space<vmem>>, vector<8x1xi32>
    %c128_i32 = arith.constant 128 : i32
    %34 = arith.muli %arg1, %c128_i32 : i32
    %35 = tpu.iota {dimensions = array<i32: 1>} : vector<8x128xi32>
    %36 = vector.broadcast %34 : i32 to vector<8x128xi32>
    %37 = arith.addi %36, %35 : vector<8x128xi32>
    %38 = vector.broadcast %33 : vector<8x1xi32> to vector<8x128xi32>
    %39 = arith.cmpi eq, %37, %38 : vector<8x128xi32>
    %40 = arith.select %39, %32, %16 : vector<8x128xi1>, vector<8x128xf32>
    %cst_16 = arith.constant 3.000000e+01 : f32
    %41 = vector.broadcast %cst_16 : f32 to vector<8x128xf32>
    %42 = arith.mulf %40, %41 : vector<8x128xf32>
    %c0_17 = arith.constant 0 : index
    %c0_18 = arith.constant 0 : index
    %43 = vector.load %arg5[%c0_17, %c0_18] : memref<8x128xf32, #tpu.memory_space<vmem>>, vector<8x128xf32>
    tpu.vector_store %arg5[%c0_17, %c0_18], %42 {strides = array<i32>} : memref<8x128xf32, #tpu.memory_space<vmem>>, vector<8x128xf32>,
    %c0_19 = arith.constant 0 : index
    %c0_20 = arith.constant 0 : index
    %44 = vector.load %arg8[%c0_19, %c0_20] : memref<8x1xf32, #tpu.memory_space<vmem>>, vector<8x1xf32>
    %cst_21 = arith.constant dense<0xFF800000> : vector<8xf32>
    %45 = vector.multi_reduction <maximumf>, %42, %cst_21 [1] : vector<8x128xf32> to vector<8xf32>
    %46 = vector.shape_cast %45 : vector<8xf32> to vector<8x1xf32>
    %47 = arith.maximumf %44, %46 : vector<8x1xf32>
    %c0_22 = arith.constant 0 : index
    %c0_23 = arith.constant 0 : index
    %48 = vector.load %arg9[%c0_22, %c0_23] : memref<8x1xf32, #tpu.memory_space<vmem>>, vector<8x1xf32>
    %49 = arith.subf %44, %47 : vector<8x1xf32>
    %50 = math.exp %49 : vector<8x1xf32>
    %51 = arith.mulf %48, %50 : vector<8x1xf32>
    %52 = vector.broadcast %47 : vector<8x1xf32> to vector<8x128xf32>
    %53 = arith.subf %42, %52 : vector<8x128xf32>
    %54 = math.exp %53 : vector<8x128xf32>
    %cst_24 = arith.constant dense<0.000000e+00> : vector<8xf32>
    %55 = vector.multi_reduction <add>, %54, %cst_24 [1] : vector<8x128xf32> to vector<8xf32>
    %56 = vector.shape_cast %55 : vector<8xf32> to vector<8x1xf32>
    %57 = arith.addf %51, %56 : vector<8x1xf32>
    %c0_25 = arith.constant 0 : index
    %c0_26 = arith.constant 0 : index
    %58 = vector.load %arg9[%c0_25, %c0_26] : memref<8x1xf32, #tpu.memory_space<vmem>>, vector<8x1xf32>
    tpu.vector_store %arg9[%c0_25, %c0_26], %57 {strides = array<i32>} : memref<8x1xf32, #tpu.memory_space<vmem>>, vector<8x1xf32>,
    %c0_27 = arith.constant 0 : index
    %c0_28 = arith.constant 0 : index
    %59 = vector.load %arg8[%c0_27, %c0_28] : memref<8x1xf32, #tpu.memory_space<vmem>>, vector<8x1xf32>
    tpu.vector_store %arg8[%c0_27, %c0_28], %47 {strides = array<i32>} : memref<8x1xf32, #tpu.memory_space<vmem>>, vector<8x1xf32>,
    %c0_29 = arith.constant 0 : index
    %c0_30 = arith.constant 0 : index
    %60 = vector.load %arg10[%c0_29, %c0_30] : memref<8x1xf32, #tpu.memory_space<vmem>>, vector<8x1xf32>
    %cst_31 = arith.constant 0.000000e+00 : f32
    %61 = vector.broadcast %cst_31 : f32 to vector<8x128xf32>
    %62 = arith.select %39, %42, %61 : vector<8x128xi1>, vector<8x128xf32>
    %cst_32 = arith.constant dense<0.000000e+00> : vector<8xf32>
    %63 = vector.multi_reduction <add>, %62, %cst_32 [1] : vector<8x128xf32> to vector<8xf32>
    %64 = vector.shape_cast %63 : vector<8xf32> to vector<8x1xf32>
    %65 = arith.addf %60, %64 : vector<8x1xf32>
    %c0_33 = arith.constant 0 : index
    %c0_34 = arith.constant 0 : index
    %66 = vector.load %arg10[%c0_33, %c0_34] : memref<8x1xf32, #tpu.memory_space<vmem>>, vector<8x1xf32>
    tpu.vector_store %arg10[%c0_33, %c0_34], %65 {strides = array<i32>} : memref<8x1xf32, #tpu.memory_space<vmem>>, vector<8x1xf32>,
    %c3_i32 = arith.constant 3 : i32
    %67 = arith.cmpi eq, %arg1, %c3_i32 : i32
    %68 = arith.extui %67 : i1 to i32
    %c0_i32_35 = arith.constant 0 : i32
    %69 = arith.cmpi ne, %68, %c0_i32_35 : i32
    scf.if %69 {
      %c0_36 = arith.constant 0 : index
      %c0_37 = arith.constant 0 : index
      %70 = vector.load %arg8[%c0_36, %c0_37] : memref<8x1xf32, #tpu.memory_space<vmem>>, vector<8x1xf32>
      %c0_38 = arith.constant 0 : index
      %c0_39 = arith.constant 0 : index
      %71 = vector.load %arg9[%c0_38, %c0_39] : memref<8x1xf32, #tpu.memory_space<vmem>>, vector<8x1xf32>
      %72 = math.log %71 : vector<8x1xf32>
      %73 = arith.addf %70, %72 : vector<8x1xf32>
      %c0_40 = arith.constant 0 : index
      %c0_41 = arith.constant 0 : index
      %74 = vector.load %arg10[%c0_40, %c0_41] : memref<8x1xf32, #tpu.memory_space<vmem>>, vector<8x1xf32>
      %75 = arith.subf %73, %74 : vector<8x1xf32>
      %c0_42 = arith.constant 0 : index
      %c0_43 = arith.constant 0 : index
      %76 = vector.load %arg6[%c0_42, %c0_43] : memref<8x1xf32, #tpu.memory_space<vmem>>, vector<8x1xf32>
      tpu.vector_store %arg6[%c0_42, %c0_43], %75 {strides = array<i32>} : memref<8x1xf32, #tpu.memory_space<vmem>>, vector<8x1xf32>,
    } else {
    }
    return
  }
  func.func @transform_0(%arg0: i32, %arg1: i32) -> (i32, i32) {
    %c0_i32 = arith.constant 0 : i32
    %c0_i32_0 = arith.constant 0 : i32
    return %arg0, %c0_i32 : i32, i32
  }
  func.func @transform_1(%arg0: i32, %arg1: i32) -> (i32, i32) {
    %c0_i32 = arith.constant 0 : i32
    %c0_i32_0 = arith.constant 0 : i32
    return %arg1, %c0_i32 : i32, i32
  }
  func.func @transform_2(%arg0: i32, %arg1: i32) -> (i32, i32) {
    %c0_i32 = arith.constant 0 : i32
    %c0_i32_0 = arith.constant 0 : i32
    return %arg0, %c0_i32 : i32, i32
  }
  func.func @transform_3(%arg0: i32, %arg1: i32) -> (i32, i32) {
    %c0_i32 = arith.constant 0 : i32
    return %arg0, %arg1 : i32, i32
  }
  func.func @transform_4(%arg0: i32, %arg1: i32) -> (i32, i32) {
    %c0_i32 = arith.constant 0 : i32
    %c0_i32_0 = arith.constant 0 : i32
    return %arg0, %c0_i32 : i32, i32
  }
}

</mosaic_0001>

<llo_original>
// kernel: tpu_custom_call.1
$region0: #{tpu_custom_call.1}
  #allocation0 [shape = 'u32[]', space=smem, size = 0x4, offset = 0x4, fixed_abs, tag = 'smem constant byte address 0x4 - core index']
  #allocation1 [shape = 'u32[144,128]{1,0:T(1,128)}', space=vmem, size = 0x12000, scoped, tag = 'internal scratch']
  #allocation2 [shape = 'f32[8,1]{1,0:T(8,128)}', space=vmem, size = 0x1000, scoped, tag = 'scratch operand']
  #allocation3 [shape = 'f32[8,1]{1,0:T(8,128)}', space=vmem, size = 0x1000, scoped, tag = 'scratch operand']
  #allocation4 [shape = 'f32[8,1]{1,0:T(8,128)}', space=vmem, size = 0x1000, scoped, tag = 'scratch operand']
  #allocation5 [shape = 'f32[8,1]{1,0:T(8,128)}', space=vmem, size = 0x1000, scoped, tag = 'scratch operand']
  %s0 = inlined_call_operand.vmem [shape: f32[8,64], index: 0, kind: input, shape index: {}]
  %s1 = inlined_call_operand.vmem [shape: f32[512,64], index: 1, kind: input, shape index: {}]
  %s2 = inlined_call_operand.vmem [shape: s32[8,1], index: 2, kind: input, shape index: {}]
  %s3 = inlined_call_operand.hbm [shape: f32[8,512], index: 3, kind: output, shape index: {0}]
  %s4 = inlined_call_operand.vmem [shape: f32[8,1], index: 4, kind: output, shape index: {1}]
  %5 = xla_tuple %s3, %s4
  %s6 = sld [smem:[#allocation0]]
  $region61: #{tpu_custom_call.1} parent=0
    _
  %s8 = ssub.s32 1, %s6
  %s9 = scalar_select 0, %s8, %s6
  $region1: #{tpu_custom_call.1} parent=0
    #allocation6 [shape = 'u8[8192]{0}', space=vmem, size = 0x2000, scoped, tag = 'output window, operand 0']
    #allocation7 [shape = 's32[2]{0}', space=sflag, size = 0x8, scoped, tag = 'scoped memory for tpu_custom_call.1']
    %10 = vsyncpa [#allocation7], 0
    %s11 = scalar_lea.sflag [#allocation7], 1
    %12 = vsyncpa %s11, 0
    loop: start=0, step=1, limit=6
    $region2: #{tpu_custom_call.1} parent=1 // loop_pre_header
      _
    $region3: #{tpu_custom_call.1} parent=1 // loop_header
      %s14 = sphi 0, %s18
      %p15 = scmp.ge.s32.totalorder %s14, 6
      %s21 = sphi 0, %s33
      %s22 = sphi 0, %s29
      %s23 = sphi 0, %s21
      %s24 = sphi 0, %s22
      %s25 = sphi 0, %s23
      %s26 = sphi 0, %s24
      %s36 = sphi 0, %s38
      %s39 = sphi 0, %s36
      %s40 = sphi 0, %s39
      %s56 = sphi 0, %s40
      %s62 = sphi 0, %s64
      %s65 = sphi 0, %s62
      %s66 = sphi 0, %s65
      %s82 = sphi 0, %s66
      %s88 = sphi 0, %s90
      %s91 = sphi 0, %s88
      %s92 = sphi 0, %s91
      %s108 = sphi 0, %s92
      %s116 = sphi 0, %s118
      %s119 = sphi 0, %s116
      %s120 = sphi 0, %s119
      %s136 = sphi 0, %s120
      %s142 = sphi 0, %s144
      %s145 = sphi 0, %s142
      %s146 = sphi 0, %s145
      %s162 = sphi 0, %s146
    $region4: #{tpu_custom_call.1} parent=1 // loop_header_branch
      %17 = sbr.rel (%p15) target = $region8
    $region5: #{tpu_custom_call.1} parent=1 // loop_body
      %s19 = ssub.s32 %s14, 1
      %s20 = ssub.s32 %s14, 2
      %s27 = sadd.s32 1, %s22
      %p28 = scmp.ge.s32.totalorder %s27, 4
      %s29 = scalar_select %p28, 0, %s27
      %s30 = sadd.s32 1, %s21
      %s31 = scalar_select %p28, %s30, %s21
      %p32 = scmp.ge.s32.totalorder %s31, 1
      %s33 = scalar_select %p32, 0, %s31
      %s34 = ssub.s32 %s21, %s33
      %p35 = scmp.eq.s32.totalorder %s34, 0
      %s37 = sadd.s32 %s36, 1
      %s38 = scalar_select %p35, %s36, %s37
      %p41 = pneg %p35
      %p42 = scmp.eq.s32.totalorder %s14, 3
      %p43 = por %p41, %p42
      %p44 = scmp.ne.s32.totalorder %s36, %s39
      %p45 = scmp.eq.s32.totalorder %s14, 0
      %p46 = por %p44, %p45
      %p47 = scmp.ne.s32.totalorder %s36, %s39
      %p48 = scmp.eq.s32.totalorder %s19, 3
      %p49 = por %p47, %p48
      %p50 = scmp.ne.s32.totalorder %s39, %s40
      %p51 = scmp.eq.s32.totalorder %s19, 0
      %p52 = por %p50, %p51
      %p53 = scmp.ne.s32.totalorder %s39, %s40
      %p54 = scmp.eq.s32.totalorder %s20, 3
      %p55 = por %p53, %p54
      %p57 = scmp.ne.s32.totalorder %s40, %s56
      %p58 = scmp.eq.s32.totalorder %s20, 0
      %p59 = por %p57, %p58
      %s60 = ssub.s32 %s22, %s29
      %p61 = scmp.eq.s32.totalorder %s60, 0
      %s63 = sadd.s32 %s62, 1
      %s64 = scalar_select %p61, %s62, %s63
      %p67 = pneg %p61
      %p68 = scmp.eq.s32.totalorder %s14, 3
      %p69 = por %p67, %p68
      %p70 = scmp.ne.s32.totalorder %s62, %s65
      %p71 = scmp.eq.s32.totalorder %s14, 0
      %p72 = por %p70, %p71
      %p73 = scmp.ne.s32.totalorder %s62, %s65
      %p74 = scmp.eq.s32.totalorder %s19, 3
      %p75 = por %p73, %p74
      %p76 = scmp.ne.s32.totalorder %s65, %s66
      %p77 = scmp.eq.s32.totalorder %s19, 0
      %p78 = por %p76, %p77
      %p79 = scmp.ne.s32.totalorder %s65, %s66
      %p80 = scmp.eq.s32.totalorder %s20, 3
      %p81 = por %p79, %p80
      %p83 = scmp.ne.s32.totalorder %s66, %s82
      %p84 = scmp.eq.s32.totalorder %s20, 0
      %p85 = por %p83, %p84
      %s86 = ssub.s32 %s21, %s33
      %p87 = scmp.eq.s32.totalorder %s86, 0
      %s89 = sadd.s32 %s88, 1
      %s90 = scalar_select %p87, %s88, %s89
      %p93 = pneg %p87
      %p94 = scmp.eq.s32.totalorder %s14, 3
      %p95 = por %p93, %p94
      %p96 = scmp.ne.s32.totalorder %s88, %s91
      %p97 = scmp.eq.s32.totalorder %s14, 0
      %p98 = por %p96, %p97
      %p99 = scmp.ne.s32.totalorder %s88, %s91
      %p100 = scmp.eq.s32.totalorder %s19, 3
      %p101 = por %p99, %p100
      %p102 = scmp.ne.s32.totalorder %s91, %s92
      %p103 = scmp.eq.s32.totalorder %s19, 0
      %p104 = por %p102, %p103
      %p105 = scmp.ne.s32.totalorder %s91, %s92
      %p106 = scmp.eq.s32.totalorder %s20, 3
      %p107 = por %p105, %p106
      %p109 = scmp.ne.s32.totalorder %s92, %s108
      %p110 = scmp.eq.s32.totalorder %s20, 0
      %p111 = por %p109, %p110
      %s112 = ssub.s32 %s21, %s33
      %s113 = ssub.s32 %s22, %s29
      %s114 = sor.u32 %s112, %s113
      %p115 = scmp.eq.s32.totalorder %s114, 0
      %s117 = sadd.s32 %s116, 1
      %s118 = scalar_select %p115, %s116, %s117
      %p121 = pneg %p115
      %p122 = scmp.eq.s32.totalorder %s14, 3
      %p123 = por %p121, %p122
      %p124 = scmp.ne.s32.totalorder %s116, %s119
      %p125 = scmp.eq.s32.totalorder %s14, 0
      %p126 = por %p124, %p125
      %p127 = scmp.ne.s32.totalorder %s116, %s119
      %p128 = scmp.eq.s32.totalorder %s19, 3
      %p129 = por %p127, %p128
      %p130 = scmp.ne.s32.totalorder %s119, %s120
      %p131 = scmp.eq.s32.totalorder %s19, 0
      %p132 = por %p130, %p131
      %p133 = scmp.ne.s32.totalorder %s119, %s120
      %p134 = scmp.eq.s32.totalorder %s20, 3
      %p135 = por %p133, %p134
      %p137 = scmp.ne.s32.totalorder %s120, %s136
      %p138 = scmp.eq.s32.totalorder %s20, 0
      %p139 = por %p137, %p138
      %s140 = ssub.s32 %s21, %s33
      %p141 = scmp.eq.s32.totalorder %s140, 0
      %s143 = sadd.s32 %s142, 1
      %s144 = scalar_select %p141, %s142, %s143
      %p147 = pneg %p141
      %p148 = scmp.eq.s32.totalorder %s14, 3
      %p149 = por %p147, %p148
      %p150 = scmp.ne.s32.totalorder %s142, %s145
      %p151 = scmp.eq.s32.totalorder %s14, 0
      %p152 = por %p150, %p151
      %p153 = scmp.ne.s32.totalorder %s142, %s145
      %p154 = scmp.eq.s32.totalorder %s19, 3
      %p155 = por %p153, %p154
      %p156 = scmp.ne.s32.totalorder %s145, %s146
      %p157 = scmp.eq.s32.totalorder %s19, 0
      %p158 = por %p156, %p157
      %p159 = scmp.ne.s32.totalorder %s145, %s146
      %p160 = scmp.eq.s32.totalorder %s20, 3
      %p161 = por %p159, %p160
      %p163 = scmp.ne.s32.totalorder %s146, %s162
      %p164 = scmp.eq.s32.totalorder %s20, 0
      %p165 = por %p163, %p164
      %p166 = scmp.le.s32.totalorder 1, %s14
      %p167 = scmp.lt.s32.totalorder %s14, 5
      %p168 = pnand %p166, %p167
      %p169 = pneg %p168
      // Predicated region
      $region9: #{tpu_custom_call.1} parent=5 // pred_check
        _
      $region10: #{tpu_custom_call.1} parent=5 // pred_check_branch
        %171 = sbr.rel (%p168) target = $region12
      $region11: #{tpu_custom_call.1} parent=5 // pred_region
        %s172 = ssub.s32 %s14, 1
        // Predicated region
        $region13: #{tpu_custom_call.1} parent=11 // pred_check
          %p173 = pneg %p52
        $region14: #{tpu_custom_call.1} parent=11 // pred_check_branch
          %175 = sbr.rel (%p173) target = $region16
        $region15: #{tpu_custom_call.1} parent=11 // pred_region
          %p176 = scmp.lt.s32.totalorder %s23, 0
          %s177 = scalar_select %p176, %s23, 0
          %s178 = smul.addr %s177, 8
          %s179 = scalar_lea.vmem %s0, %s178
        $region16: #{tpu_custom_call.1} parent=11 // pred_fallthru
          _
        // Predicated region
        $region17: #{tpu_custom_call.1} parent=11 // pred_check
          %p180 = pneg %p104
        $region18: #{tpu_custom_call.1} parent=11 // pred_check_branch
          %182 = sbr.rel (%p180) target = $region20
        $region19: #{tpu_custom_call.1} parent=11 // pred_region
          %p183 = scmp.lt.s32.totalorder %s23, 0
          %s184 = scalar_select %p183, %s23, 0
          %s185 = smul.addr %s184, 8
          %s186 = scalar_lea.vmem %s2, %s185
        $region20: #{tpu_custom_call.1} parent=11 // pred_fallthru
          _
      $region12: #{tpu_custom_call.1} parent=5 // pred_fallthru
        _
      %p187 = scmp.lt.s32.totalorder %s14, 4
      // Predicated region
      $region21: #{tpu_custom_call.1} parent=5 // pred_check
        %p188 = pneg %p187
      $region22: #{tpu_custom_call.1} parent=5 // pred_check_branch
        %190 = sbr.rel (%p188) target = $region24
      $region23: #{tpu_custom_call.1} parent=5 // pred_region
        // Predicated region
        $region25: #{tpu_custom_call.1} parent=23 // pred_check
          %p191 = pneg %p72
        $region26: #{tpu_custom_call.1} parent=23 // pred_check_branch
          %193 = sbr.rel (%p191) target = $region28
        $region27: #{tpu_custom_call.1} parent=23 // pred_region
          %s194 = smul.u32 16, %s22
          %p195 = scmp.lt.s32.totalorder %s194, 63
          %s196 = scalar_select %p195, %s194, 63
          %s197 = smul.addr %s196, 8
          %s198 = scalar_lea.vmem %s1, %s197
          %s199 = smul.u32 16, %s22
        $region28: #{tpu_custom_call.1} parent=23 // pred_fallthru
          _
      $region24: #{tpu_custom_call.1} parent=5 // pred_fallthru
        _
      %p200 = scmp.le.s32.totalorder 1, %s14
      %p201 = scmp.lt.s32.totalorder %s14, 5
      %p202 = pnand %p200, %p201
      %p203 = pneg %p202
      // Predicated region
      $region29: #{tpu_custom_call.1} parent=5 // pred_check
        _
      $region30: #{tpu_custom_call.1} parent=5 // pred_check_branch
        %205 = sbr.rel (%p202) target = $region32
      $region31: #{tpu_custom_call.1} parent=5 // pred_region
        %s206 = ssub.s32 %s14, 1
        %p207 = scmp.lt.s32.totalorder %s23, 0
        %s208 = scalar_select %p207, %s23, 0
        %s209 = smul.addr %s208, 8
        %s210 = scalar_lea.vmem %s0, %s209
        %p211 = pneg %p52
        %p212 = pneg %p49
        %s213 = smul.u32 16, %s24
        %p214 = scmp.lt.s32.totalorder %s213, 63
        %s215 = scalar_select %p214, %s213, 63
        %s216 = smul.addr %s215, 8
        %s217 = scalar_lea.vmem %s1, %s216
        %p218 = pneg %p78
        %p219 = pneg %p75
        %p220 = scmp.lt.s32.totalorder %s23, 0
        %s221 = scalar_select %p220, %s23, 0
        %s222 = smul.addr %s221, 8
        %s223 = scalar_lea.vmem %s2, %s222
        %p224 = pneg %p104
        %p225 = pneg %p101
        %p226 = pneg %p132
        %p227 = pneg %p129
        %s228 = sand.u32 %s119, 1
        %s229 = scalar_lea.sflag [#allocation7], %s228
        %s230 = sand.u32 %s119, 1
        %s231 = smul.addr %s230, 8
        %s232 = scalar_lea.vmem [#allocation6], %s231
        %p233 = pneg %p158
        %p234 = pneg %p155
        %p235 = scmp.lt.s32.totalorder %s23, 0
        %s236 = scalar_select %p235, %s23, 0
        %s237 = smul.addr %s236, 8
        %s238 = scalar_lea.vmem %s4, %s237
        %p239 = scmp.lt.s32.totalorder %s23, 0
        %s240 = scalar_select %p239, %s23, 0
        %s241 = smul.addr %s240, 8
        %s242 = scalar_lea.vmem %s0, %s241
        %s243 = smul.u32 16, %s24
        %p244 = scmp.lt.s32.totalorder %s243, 63
        %s245 = scalar_select %p244, %s243, 63
        %s246 = smul.addr %s245, 8
        %s247 = scalar_lea.vmem %s1, %s246
        %s248 = smul.u32 16, %s24
        %p249 = scmp.lt.s32.totalorder %s23, 0
        %s250 = scalar_select %p249, %s23, 0
        %s251 = smul.addr %s250, 8
        %s252 = scalar_lea.vmem %s2, %s251
        %p253 = scmp.lt.s32.totalorder %s23, 0
        %s254 = scalar_select %p253, %s23, 0
        %s255 = smul.addr %s254, 8
        %s256 = scalar_lea.vmem %s4, %s255
        %p257 = scmp.eq.s32.totalorder %s24, 0
        // Predicated region
        $region33: #{tpu_custom_call.1} parent=31 // pred_check
          %p258 = pneg %p257
        $region34: #{tpu_custom_call.1} parent=31 // pred_check_branch
          %260 = sbr.rel (%p258) target = $region36
        $region35: #{tpu_custom_call.1} parent=31 // pred_region
          %v261 = vld [vmem:[%s242] sm:$0xff]
          %v262 = vmul.f32 %v261, %v261
          %vm263 = vcmask 523264
          %v264 = vsel %vm263, %v262, 0.0
          %265 = vadd.xlane.f32.xlu0 %v264
          %v266 = vpop.xlane.xlu0 %265
          %v267 = vmax.f32 %v266, 1e-24
          %v268 = vrsqrt.pop %v267
          %vm269 = vcmask 7168
          %270 = vst.msk [vmem:[#allocation2] sm:$0xff] %vm269, %v268
          %271 = vst.msk [vmem:[#allocation3] sm:$0xff] %vm269, -inf
          %272 = vst.msk [vmem:[#allocation4] sm:$0xff] %vm269, 0.0
          %273 = vst.msk [vmem:[#allocation5] sm:$0xff] %vm269, 0.0
        $region36: #{tpu_custom_call.1} parent=31 // pred_fallthru
          _
        %v274 = vld [vmem:[%s242] sm:$0xff]
        %v275 = vld [vmem:[%s247] sm:$0xff]
        %v276 = vld [vmem:[%s247 + $0x8] sm:$0xff]
        %v277 = vld [vmem:[%s247 + $0x10] sm:$0xff]
        %v278 = vld [vmem:[%s247 + $0x18] sm:$0xff]
        %v279 = vld [vmem:[%s247 + $0x20] sm:$0xff]
        %v280 = vld [vmem:[%s247 + $0x28] sm:$0xff]
        %v281 = vld [vmem:[%s247 + $0x30] sm:$0xff]
        %v282 = vld [vmem:[%s247 + $0x38] sm:$0xff]
        %v283 = vld [vmem:[%s247 + $0x40] sm:$0xff]
        %v284 = vld [vmem:[%s247 + $0x48] sm:$0xff]
        %v285 = vld [vmem:[%s247 + $0x50] sm:$0xff]
        %v286 = vld [vmem:[%s247 + $0x58] sm:$0xff]
        %v287 = vld [vmem:[%s247 + $0x60] sm:$0xff]
        %v288 = vld [vmem:[%s247 + $0x68] sm:$0xff]
        %v289 = vld [vmem:[%s247 + $0x70] sm:$0xff]
        %v290 = vld [vmem:[%s247 + $0x78] sm:$0xff]
        %v291 = vmul.f32 %v275, %v275
        %v292 = vmul.f32 %v276, %v276
        %v293 = vmul.f32 %v277, %v277
        %v294 = vmul.f32 %v278, %v278
        %v295 = vmul.f32 %v279, %v279
        %v296 = vmul.f32 %v280, %v280
        %v297 = vmul.f32 %v281, %v281
        %v298 = vmul.f32 %v282, %v282
        %v299 = vmul.f32 %v283, %v283
        %v300 = vmul.f32 %v284, %v284
        %v301 = vmul.f32 %v285, %v285
        %v302 = vmul.f32 %v286, %v286
        %v303 = vmul.f32 %v287, %v287
        %v304 = vmul.f32 %v288, %v288
        %v305 = vmul.f32 %v289, %v289
        %v306 = vmul.f32 %v290, %v290
        %vm307 = vcmask 523264
        %v308 = vsel %vm307, %v291, 0.0
        %309 = vadd.xlane.f32.xlu0 %v308
        %v310 = vpop.xlane.xlu0 %309
        %v311 = vsel %vm307, %v292, 0.0
        %312 = vadd.xlane.f32.xlu0 %v311
        %v313 = vpop.xlane.xlu0 %312
        %v314 = vsel %vm307, %v293, 0.0
        %315 = vadd.xlane.f32.xlu0 %v314
        %v316 = vpop.xlane.xlu0 %315
        %v317 = vsel %vm307, %v294, 0.0
        %318 = vadd.xlane.f32.xlu0 %v317
        %v319 = vpop.xlane.xlu0 %318
        %v320 = vsel %vm307, %v295, 0.0
        %321 = vadd.xlane.f32.xlu0 %v320
        %v322 = vpop.xlane.xlu0 %321
        %v323 = vsel %vm307, %v296, 0.0
        %324 = vadd.xlane.f32.xlu0 %v323
        %v325 = vpop.xlane.xlu0 %324
        %v326 = vsel %vm307, %v297, 0.0
        %327 = vadd.xlane.f32.xlu0 %v326
        %v328 = vpop.xlane.xlu0 %327
        %v329 = vsel %vm307, %v298, 0.0
        %330 = vadd.xlane.f32.xlu0 %v329
        %v331 = vpop.xlane.xlu0 %330
        %v332 = vsel %vm307, %v299, 0.0
        %333 = vadd.xlane.f32.xlu0 %v332
        %v334 = vpop.xlane.xlu0 %333
        %v335 = vsel %vm307, %v300, 0.0
        %336 = vadd.xlane.f32.xlu0 %v335
        %v337 = vpop.xlane.xlu0 %336
        %v338 = vsel %vm307, %v301, 0.0
        %339 = vadd.xlane.f32.xlu0 %v338
        %v340 = vpop.xlane.xlu0 %339
        %v341 = vsel %vm307, %v302, 0.0
        %342 = vadd.xlane.f32.xlu0 %v341
        %v343 = vpop.xlane.xlu0 %342
        %v344 = vsel %vm307, %v303, 0.0
        %345 = vadd.xlane.f32.xlu0 %v344
        %v346 = vpop.xlane.xlu0 %345
        %v347 = vsel %vm307, %v304, 0.0
        %348 = vadd.xlane.f32.xlu0 %v347
        %v349 = vpop.xlane.xlu0 %348
        %v350 = vsel %vm307, %v305, 0.0
        %351 = vadd.xlane.f32.xlu0 %v350
        %v352 = vpop.xlane.xlu0 %351
        %v353 = vsel %vm307, %v306, 0.0
        %354 = vadd.xlane.f32.xlu0 %v353
        %v355 = vpop.xlane.xlu0 %354
        %v356 = vmax.f32 %v310, 1e-24
        %v357 = vmax.f32 %v313, 1e-24
        %v358 = vmax.f32 %v316, 1e-24
        %v359 = vmax.f32 %v319, 1e-24
        %v360 = vmax.f32 %v322, 1e-24
        %v361 = vmax.f32 %v325, 1e-24
        %v362 = vmax.f32 %v328, 1e-24
        %v363 = vmax.f32 %v331, 1e-24
        %v364 = vmax.f32 %v334, 1e-24
        %v365 = vmax.f32 %v337, 1e-24
        %v366 = vmax.f32 %v340, 1e-24
        %v367 = vmax.f32 %v343, 1e-24
        %v368 = vmax.f32 %v346, 1e-24
        %v369 = vmax.f32 %v349, 1e-24
        %v370 = vmax.f32 %v352, 1e-24
        %v371 = vmax.f32 %v355, 1e-24
        %v372 = vrsqrt.pop %v356
        %v373 = vrsqrt.pop %v357
        %v374 = vrsqrt.pop %v358
        %v375 = vrsqrt.pop %v359
        %v376 = vrsqrt.pop %v360
        %v377 = vrsqrt.pop %v361
        %v378 = vrsqrt.pop %v362
        %v379 = vrsqrt.pop %v363
        %v380 = vrsqrt.pop %v364
        %v381 = vrsqrt.pop %v365
        %v382 = vrsqrt.pop %v366
        %v383 = vrsqrt.pop %v367
        %v384 = vrsqrt.pop %v368
        %v385 = vrsqrt.pop %v369
        %v386 = vrsqrt.pop %v370
        %v387 = vrsqrt.pop %v371
        %v388 = vmul.f32 %v275, %v372
        %v389 = vmul.f32 %v276, %v373
        %v390 = vmul.f32 %v277, %v374
        %v391 = vmul.f32 %v278, %v375
        %v392 = vmul.f32 %v279, %v376
        %v393 = vmul.f32 %v280, %v377
        %v394 = vmul.f32 %v281, %v378
        %v395 = vmul.f32 %v282, %v379
        %v396 = vmul.f32 %v283, %v380
        %v397 = vmul.f32 %v284, %v381
        %v398 = vmul.f32 %v285, %v382
        %v399 = vmul.f32 %v286, %v383
        %v400 = vmul.f32 %v287, %v384
        %v401 = vmul.f32 %v288, %v385
        %v402 = vmul.f32 %v289, %v386
        %v403 = vmul.f32 %v290, %v387
        %v405 = vsel %vm307, %v274, 0
        %v408 = vsel %vm307, %v388, 0
        %v411 = vsel %vm307, %v389, 0
        %v414 = vsel %vm307, %v390, 0
        %v417 = vsel %vm307, %v391, 0
        %v420 = vsel %vm307, %v392, 0
        %v423 = vsel %vm307, %v393, 0
        %v426 = vsel %vm307, %v394, 0
        %v429 = vsel %vm307, %v395, 0
        %v432 = vsel %vm307, %v396, 0
        %v435 = vsel %vm307, %v397, 0
        %v438 = vsel %vm307, %v398, 0
        %v441 = vsel %vm307, %v399, 0
        %v444 = vsel %vm307, %v400, 0
        %v447 = vsel %vm307, %v401, 0
        %v450 = vsel %vm307, %v402, 0
        %v453 = vsel %vm307, %v403, 0
        %455 = vmatprep.subr.mxu0 0.0
        %456 = vmatpush1.xpose.msra.mxu0 %v453
        %457 = vmatprep.subr.mxu0 0.0
        %458 = vmatpush1.xpose.msra.mxu0 %v450
        %459 = vmatprep.subr.mxu0 0.0
        %460 = vmatpush1.xpose.msra.mxu0 %v447
        %461 = vmatprep.subr.mxu0 0.0
        %462 = vmatpush1.xpose.msra.mxu0 %v444
        %463 = vmatprep.subr.mxu0 0.0
        %464 = vmatpush1.xpose.msra.mxu0 %v441
        %465 = vmatprep.subr.mxu0 0.0
        %466 = vmatpush1.xpose.msra.mxu0 %v438
        %467 = vmatprep.subr.mxu0 0.0
        %468 = vmatpush1.xpose.msra.mxu0 %v435
        %469 = vmatprep.subr.mxu0 0.0
        %470 = vmatpush1.xpose.msra.mxu0 %v432
        %471 = vmatprep.subr.mxu0 0.0
        %472 = vmatpush1.xpose.msra.mxu0 %v429
        %473 = vmatprep.subr.mxu0 0.0
        %474 = vmatpush1.xpose.msra.mxu0 %v426
        %475 = vmatprep.subr.mxu0 0.0
        %476 = vmatpush1.xpose.msra.mxu0 %v423
        %477 = vmatprep.subr.mxu0 0.0
        %478 = vmatpush1.xpose.msra.mxu0 %v420
        %479 = vmatprep.subr.mxu0 0.0
        %480 = vmatpush1.xpose.msra.mxu0 %v417
        %481 = vmatprep.subr.mxu0 0.0
        %482 = vmatpush1.xpose.msra.mxu0 %v414
        %483 = vmatprep.subr.mxu0 0.0
        %484 = vmatpush1.xpose.msra.mxu0 %v411
        %485 = vmatprep.subr.mxu0 0.0
        %486 = vmatpush1.xpose.msra.mxu0 %v408
        %487 = vmatprep.subr.mxu0 0.0
        %488 = vmatpush2.xpose.msra.mxu0 0.0
        %489 = vmatprep.subr.mxu0 0.0
        %490 = vmatpush2.xpose.msra.mxu0 0.0
        %491 = vmatprep.subr.mxu0 0.0
        %492 = vmatpush2.xpose.msra.mxu0 0.0
        %493 = vmatprep.subr.mxu0 0.0
        %494 = vmatpush2.xpose.msra.mxu0 0.0
        %495 = vmatprep.subr.mxu0 0.0
        %496 = vmatpush2.xpose.msra.mxu0 0.0
        %497 = vmatprep.subr.mxu0 0.0
        %498 = vmatpush2.xpose.msra.mxu0 0.0
        %499 = vmatprep.subr.mxu0 0.0
        %500 = vmatpush2.xpose.msra.mxu0 0.0
        %501 = vmatprep.subr.mxu0 0.0
        %502 = vmatpush2.xpose.msra.mxu0 0.0
        %503 = vmatprep.subr.mxu0 0.0
        %504 = vmatpush2.xpose.msra.mxu0 0.0
        %505 = vmatprep.subr.mxu0 0.0
        %506 = vmatpush2.xpose.msra.mxu0 0.0
        %507 = vmatprep.subr.mxu0 0.0
        %508 = vmatpush2.xpose.msra.mxu0 0.0
        %509 = vmatprep.subr.mxu0 0.0
        %510 = vmatpush2.xpose.msra.mxu0 0.0
        %511 = vmatprep.subr.mxu0 0.0
        %512 = vmatpush2.xpose.msra.mxu0 0.0
        %513 = vmatprep.subr.mxu0 0.0
        %514 = vmatpush2.xpose.msra.mxu0 0.0
        %515 = vmatprep.subr.mxu0 0.0
        %516 = vmatpush2.xpose.msra.mxu0 0.0
        %517 = vmatprep.subr.mxu0 0.0
        %518 = vmatpush2.xpose.msra.mxu0 0.0
        %519 = vmatprep.mubr.f32.mxu0 0.0
        %520 = vmatmul.mubr.f32.gmra.mxu0 %v405
        %v521 = vpop.f32.mrf.mxu0
        %v522 = vadd.f32 0.0, %v521
        %v523 = vpop.f32.mrf.mxu0
        %524 = vdwg.mxu0
        %v525 = vld [vmem:[#allocation2] sm:$0xff]
        %527 = vset.pattern.permute.xlu0 0
        %528 = vperm.xlu0 %527, %v525
        %v529 = vpop.permute.xlu0 %528
        %v531 = vmul.f32 %v522, %v529
        %v532 = vmul.f32 %v531, %v531
        %v533 = vsub.f32 1.0, %v532
        %v534 = vmax.f32 %v533, 0.0
        %v535 = vrsqrt.pop %v534
        %v536 = vmul.f32 %v534, %v535
        %vm537 = vcmp.eq.f32.partialorder %v534, inf
        %v538 = vsel %vm537, %v534, %v536
        %vm539 = vcmp.eq.f32.partialorder %v534, 0.0
        %v540 = vand.u32 %v534, 2147483648
        %v541 = vsel %vm539, %v540, %v538
        %v542 = vmul.f32 %v531, 0.87758255
        %v543 = vmul.f32 %v541, 0.47942555
        %v544 = vsub.f32 %v542, %v543
        %vm545 = vcmp.gt.f32.partialorder %v531, -0.87758255
        %v546 = vsub.f32 %v531, 0.23971277
        %v547 = vsel %vm545, %v544, %v546
        %v548 = vld [vmem:[%s252] sm:$0xff]
        %s549 = smul.u32 %s24, 128
        %v550 = vlaneseq
        %v551 = vand.u32 %v550, 127
        %v552 = vstv %s549
        %v553 = vadd.s32 %v552, %v551
        %554 = vset.pattern.permute.xlu0 0
        %555 = vperm.xlu0 %554, %v548
        %v556 = vpop.permute.xlu0 %555
        %vm557 = vcmp.eq.s32.totalorder %v553, %v556
        %v558 = vsel %vm557, %v547, %v531
        %v559 = vmul.f32 %v558, 30.0
        %560 = vst [vmem:[%s232] sm:$0xff] %v559
        %v561 = vld [vmem:[#allocation3] sm:$0xff]
        %562 = vmax.xlane.f32.xlu0 %v559
        %v563 = vpop.xlane.xlu0 %562
        %v564 = vmax.f32 %v561, %v563
        %v565 = vld [vmem:[#allocation4] sm:$0xff]
        %v566 = vsub.f32 %v561, %v564
        %v567 = vmul.f32 %v566, 1.442695
        %v568 = vpow.pop %v567
        %v569 = vmul.f32 %v565, %v568
        %571 = vset.pattern.permute.xlu0 0
        %572 = vperm.xlu0 %571, %v564
        %v573 = vpop.permute.xlu0 %572
        %v575 = vsub.f32 %v559, %v573
        %v576 = vmul.f32 %v575, 1.442695
        %v577 = vpow.pop %v576
        %578 = vadd.xlane.f32.xlu0 %v577
        %v579 = vpop.xlane.xlu0 %578
        %v580 = vadd.f32 %v569, %v579
        %vm581 = vcmask 7168
        %582 = vst.msk [vmem:[#allocation4] sm:$0xff] %vm581, %v580
        %583 = vst.msk [vmem:[#allocation3] sm:$0xff] %vm581, %v564
        %v584 = vld [vmem:[#allocation5] sm:$0xff]
        %v585 = vsel %vm557, %v559, 0.0
        %586 = vadd.xlane.f32.xlu0 %v585
        %v587 = vpop.xlane.xlu0 %586
        %v588 = vadd.f32 %v584, %v587
        %589 = vst.msk [vmem:[#allocation5] sm:$0xff] %vm581, %v588
        %p590 = scmp.eq.s32.totalorder %s24, 3
        // Predicated region
        $region37: #{tpu_custom_call.1} parent=31 // pred_check
          %p591 = pneg %p590
        $region38: #{tpu_custom_call.1} parent=31 // pred_check_branch
          %593 = sbr.rel (%p591) target = $region40
        $region39: #{tpu_custom_call.1} parent=31 // pred_region
          %v594 = vld [vmem:[#allocation3] sm:$0xff]
          %v595 = vld [vmem:[#allocation4] sm:$0xff]
          %v596 = vlog2.pop %v595
          %v597 = vmul.f32 %v596, 0.6931472
          %v598 = vadd.f32 %v594, %v597
          %v599 = vld [vmem:[#allocation5] sm:$0xff]
          %v600 = vsub.f32 %v598, %v599
          %601 = vst.msk [vmem:[%s256] sm:$0xff] %vm581, %v600
        $region40: #{tpu_custom_call.1} parent=31 // pred_fallthru
          _
        %s602 = sand.u32 %s119, 1
        %s603 = scalar_lea.sflag [#allocation7], %s602
        %s604 = sand.u32 %s119, 1
        %s605 = smul.addr %s604, 8
        %s606 = scalar_lea.vmem [#allocation6], %s605
        %p607 = scmp.lt.s32.totalorder %s23, 0
        %s608 = scalar_select %p607, %s23, 0
        %s609 = smul.addr %s608, 8
        %s610 = scalar_lea.vmem %s4, %s609
        // Predicated region
        $region41: #{tpu_custom_call.1} parent=31 // pred_check
          %p611 = pneg %p129
        $region42: #{tpu_custom_call.1} parent=31 // pred_check_branch
          %613 = sbr.rel (%p611) target = $region44
        $region43: #{tpu_custom_call.1} parent=31 // pred_region
          %s615 = ssub.s32 128, 128
          %616 = vsyncadd %s603, %s615
          %s617 = smul.addr %s23, 4
          %s618 = sadd.s32 %s24, %s617
          %s619 = smul.addr %s618, 128
          %s620 = scalar_lea.hbm %s3, %s619
          %s622 = sshll.u32 %s606, 4
          %s623 = int_to_ptr.vmem [resolvable:$true] %s622
          %625 = dma.vmem_to_hbm [thread:$0]  %s623, 128, %s620, %s603
        $region44: #{tpu_custom_call.1} parent=31 // pred_fallthru
          _
        // Predicated region
        $region45: #{tpu_custom_call.1} parent=31 // pred_check
          %p626 = pneg %p155
        $region46: #{tpu_custom_call.1} parent=31 // pred_check_branch
          %628 = sbr.rel (%p626) target = $region48
        $region47: #{tpu_custom_call.1} parent=31 // pred_region
          _
        $region48: #{tpu_custom_call.1} parent=31 // pred_fallthru
          _
        // Predicated region
        $region49: #{tpu_custom_call.1} parent=31 // pred_check
          %p629 = pneg %p155
        $region50: #{tpu_custom_call.1} parent=31 // pred_check_branch
          %631 = sbr.rel (%p629) target = $region52
        $region51: #{tpu_custom_call.1} parent=31 // pred_region
          %p632 = scmp.lt.s32.totalorder %s23, 0
          %s633 = scalar_select %p632, %s23, 0
          %s634 = smul.addr %s633, 8
          %s635 = scalar_lea.vmem %s4, %s634
        $region52: #{tpu_custom_call.1} parent=31 // pred_fallthru
          _
      $region32: #{tpu_custom_call.1} parent=5 // pred_fallthru
        _
      %p636 = scmp.le.s32.totalorder 2, %s14
      // Predicated region
      $region53: #{tpu_custom_call.1} parent=5 // pred_check
        %p637 = pneg %p636
      $region54: #{tpu_custom_call.1} parent=5 // pred_check_branch
        %639 = sbr.rel (%p637) target = $region56
      $region55: #{tpu_custom_call.1} parent=5 // pred_region
        %s640 = ssub.s32 %s14, 2
        // Predicated region
        $region57: #{tpu_custom_call.1} parent=55 // pred_check
          %p641 = pneg %p135
        $region58: #{tpu_custom_call.1} parent=55 // pred_check_branch
          %643 = sbr.rel (%p641) target = $region60
        $region59: #{tpu_custom_call.1} parent=55 // pred_region
          %s644 = sand.u32 %s120, 1
          %s645 = scalar_lea.sflag [#allocation7], %s644
          %s646 = sand.u32 %s120, 1
          %s647 = smul.addr %s646, 8
          %s648 = scalar_lea.vmem [#allocation6], %s647
          %649 = dma.done %s645, 128
        $region60: #{tpu_custom_call.1} parent=55 // pred_fallthru
          _
      $region56: #{tpu_custom_call.1} parent=5 // pred_fallthru
        _
    $region6: #{tpu_custom_call.1} parent=1 // loop_footer
      %s18 = sadd.s32 1, %s14
    $region7: #{tpu_custom_call.1} parent=1 // loop_footer_branch
      %13 = sbr.rel target = $region3
    $region8: #{tpu_custom_call.1} parent=1 // loop_exit
      _
    %650 = vsyncpa [#allocation7], 1
    %s651 = scalar_lea.sflag [#allocation7], 1
    %652 = vsyncpa %s651, 1

</llo_original>
